<compile_context>
chip_gen: v5e
topology: v5e:2x2
jax: 0.10.0
libtpu: 0.0.40
codegen_flags: <defaults>
</compile_context>

<pallas_src>
import jax
import jax.numpy as jnp
from jax.experimental import pallas as pl
from jax.experimental.pallas import tpu as pltpu

# ITU-R 601-2 luma coefficients (what torchvision's rgb_to_grayscale uses).
_LUMA_R = 0.2989
_LUMA_G = 0.5870
_LUMA_B = 0.1140

_LANES = 128
# ~4 MiB of input per grid step: big enough that the ~0.35 us/step overhead is
# noise even on v7x, small enough that in+out double buffering (~17 MiB) fits
# every generation's scoped VMEM with headroom.
_TARGET_BLOCK_BYTES = 4 * 1024 * 1024


def _greyscale_kernel(x_ref, o_ref):
    # x_ref / o_ref: (nb, 3, rows, lanes) VMEM tiles.
    # Pure per-lane FMA on the VPU: no captured weight array, no axis reduce,
    # no channel broadcast materialized in HBM.  Accumulate in f32, cast on
    # store (matches torchvision numerics for low-precision inputs; for
    # integer dtypes the cast truncates, same as .to(dtype)).
    r = x_ref[:, 0].astype(jnp.float32)
    g = x_ref[:, 1].astype(jnp.float32)
    b = x_ref[:, 2].astype(jnp.float32)
    gray = (_LUMA_R * r + _LUMA_G * g + _LUMA_B * b).astype(o_ref.dtype)
    o_ref[:, 0] = gray
    o_ref[:, 1] = gray
    o_ref[:, 2] = gray


def _choose_tiling(n, rows, lanes, itemsize, sub):
    """Pick (images_per_block, rows_per_block, n_row_blocks)."""
    bytes_per_row = 3 * lanes * itemsize                      # per image, per row
    # Rows per block: as many as fit ~_TARGET_BLOCK_BYTES, sublane-aligned.
    max_rows = max(sub, (_TARGET_BLOCK_BYTES // max(bytes_per_row, 1)) // sub * sub)
    if rows <= max_rows:
        row_block = rows            # full dim -> no sublane-multiple constraint
    else:
        row_block = max_rows        # multiple of `sub`; edge block is masked
    n_row_blocks = pl.cdiv(rows, row_block)

    # Fold batch images into the block when per-image blocks are small, but
    # keep >= min(4, total-work) grid steps so both v7x TensorCores get work.
    blk_bytes = bytes_per_row * row_block
    nb = int(max(1, min(n, _TARGET_BLOCK_BYTES // max(blk_bytes, 1))))
    min_steps = min(4, n * n_row_blocks)
    while nb > 1 and pl.cdiv(n, nb) * n_row_blocks < min_steps:
        nb = max(1, nb // 2)
    return nb, row_block, n_row_blocks


def _greyscale(img):
    """3-channel grayscale of an (N, 3, H, W) batch via a tiled Pallas kernel."""
    N, C, H, W = img.shape
    assert C == 3, "RandomGreyscale expects 3-channel (RGB) input"

    itemsize = jnp.dtype(img.dtype).itemsize
    sub = max(8, 32 // max(itemsize, 1))     # sublane multiple: 8 f32 / 16 bf16 / 32 i8

    L = H * W
    if L % _LANES == 0:
        # Lane-dense path: (N,3,H,W) -> (N,3,L//128,128) is a free bitcast
        # reshape (no pad, no slice); every vreg, vst and DMA burst is fully
        # populated regardless of W.
        rows = L // _LANES
        lanes = _LANES
        x = img.reshape(N, C, rows, lanes)
        unflatten = lambda o: o.reshape(N, C, H, W)
    else:
        # Direct NCHW path: W is the lane axis (== full array dim, so any W
        # lowers).  Stores are lane-masked, but we emit zero pad/slice copies,
        # which would otherwise add ~2x the kernel's own HBM traffic.
        rows = H
        lanes = W
        x = img
        unflatten = lambda o: o

    nb, r_block, n_row_blocks = _choose_tiling(N, rows, lanes, itemsize, sub)
    block = (nb, C, r_block, lanes)
    grid = (pl.cdiv(N, nb), n_row_blocks)

    out = pl.pallas_call(
        _greyscale_kernel,
        out_shape=jax.ShapeDtypeStruct(x.shape, img.dtype),
        grid=grid,
        in_specs=[pl.BlockSpec(block, lambda i, j: (i, 0, j, 0))],
        out_specs=pl.BlockSpec(block, lambda i, j: (i, 0, j, 0)),
        compiler_params=pltpu.CompilerParams(
            # Both axes independent -> megacore sharding on v7x.
            dimension_semantics=("parallel", "parallel"),
            # ~17 MiB actual use (2x double-buffered ~4 MiB blocks); 32 MiB is
            # safe headroom on v5e/v6e (128 MiB) and v7x (64 MiB) alike.
            vmem_limit_bytes=32 * 1024 * 1024,
        ),
    )(x)

    return unflatten(out)


def random_greyscale(img, key, p=0.5):
    """img: (N, 3, H, W) array. Returns same shape/dtype."""
    # Single Bernoulli decision per call (matches torch.rand(1) < p), hoisted
    # out of the kernel: the identity branch does no HBM read/write at all.
    u = jax.random.uniform(key, ())
    return jax.lax.cond(u < p, _greyscale, lambda x: x, img)


def _reference_grayscale(img):
    gray = _LUMA_R * img[:, 0] + _LUMA_G * img[:, 1] + _LUMA_B * img[:, 2]
    return jnp.broadcast_to(gray[:, None, :, :], img.shape).astype(img.dtype)


if __name__ == "__main__":
    key = jax.random.PRNGKey(0)
    k_img, k_img2, k_flip = jax.random.split(key, 3)

    # Lane-dense path (H*W % 128 == 0).
    N, C, H, W = 2, 3, 16, 16
    img = jax.random.uniform(k_img, (N, C, H, W), dtype=jnp.float32)
    out_gray = jax.block_until_ready(_greyscale(img))
    ref_gray = _reference_grayscale(img)
    assert out_gray.shape == img.shape and out_gray.dtype == img.dtype
    assert jnp.allclose(out_gray, ref_gray, atol=1e-5, rtol=1e-5), "grayscale mismatch"

    # Direct NCHW path (H*W not a multiple of 128): no pad / slice copies.
    img2 = jax.random.uniform(k_img2, (2, 3, 20, 20), dtype=jnp.float32)
    out_gray2 = jax.block_until_ready(_greyscale(img2))
    ref_gray2 = _reference_grayscale(img2)
    assert jnp.allclose(out_gray2, ref_gray2, atol=1e-5, rtol=1e-5), "unaligned mismatch"

    # Full module semantics: one Bernoulli flip per call.
    out = jax.block_until_ready(random_greyscale(img, k_flip, p=0.5))
    u = jax.random.uniform(k_flip, ())
    ref = ref_gray if bool(u < 0.5) else img
    assert out.shape == img.shape and out.dtype == img.dtype
    assert jnp.allclose(out, ref, atol=1e-5, rtol=1e-5), "random_greyscale mismatch"

    print("KERNEL_OK")
</pallas_src>

<mosaic_0001>
module attributes {stable_mosaic.version = 11 : i64} {
  func.func @_greyscale_kernel(%arg0: i32, %arg1: i32, %arg2: memref<1x3x2x128xf32, #tpu.memory_space<vmem>>, %arg3: memref<1x3x2x128xf32, #tpu.memory_space<vmem>>) attributes {dimension_semantics = [#tpu.dimension_semantics<parallel>, #tpu.dimension_semantics<parallel>], iteration_bounds = array<i64: 2, 1>, scalar_prefetch = 0 : i64, scratch_operands = 0 : i64, tpu.core_type = #tpu.core_type<tc>, window_params = [{transform_indices = @transform_0, window_bounds = array<i64: 1, 3, 2, 128>}, {transform_indices = @transform_1, window_bounds = array<i64: 1, 3, 2, 128>}]} {
    %c0 = arith.constant 0 : index
    %c0_0 = arith.constant 0 : index
    %c0_1 = arith.constant 0 : index
    %c0_2 = arith.constant 0 : index
    %0 = vector.load %arg2[%c0, %c0_0, %c0_1, %c0_2] : memref<1x3x2x128xf32, #tpu.memory_space<vmem>>, vector<1x1x2x128xf32>
    %1 = vector.shape_cast %0 : vector<1x1x2x128xf32> to vector<1x2x128xf32>
    %c0_3 = arith.constant 0 : index
    %c1 = arith.constant 1 : index
    %c0_4 = arith.constant 0 : index
    %c0_5 = arith.constant 0 : index
    %2 = vector.load %arg2[%c0_3, %c1, %c0_4, %c0_5] : memref<1x3x2x128xf32, #tpu.memory_space<vmem>>, vector<1x1x2x128xf32>
    %3 = vector.shape_cast %2 : vector<1x1x2x128xf32> to vector<1x2x128xf32>
    %c0_6 = arith.constant 0 : index
    %c2 = arith.constant 2 : index
    %c0_7 = arith.constant 0 : index
    %c0_8 = arith.constant 0 : index
    %4 = vector.load %arg2[%c0_6, %c2, %c0_7, %c0_8] : memref<1x3x2x128xf32, #tpu.memory_space<vmem>>, vector<1x1x2x128xf32>
    %5 = vector.shape_cast %4 : vector<1x1x2x128xf32> to vector<1x2x128xf32>
    %cst = arith.constant 2.989000e-01 : f32
    %6 = vector.broadcast %cst : f32 to vector<1x2x128xf32>
    %7 = arith.mulf %6, %1 : vector<1x2x128xf32>
    %cst_9 = arith.constant 5.870000e-01 : f32
    %8 = vector.broadcast %cst_9 : f32 to vector<1x2x128xf32>
    %9 = arith.mulf %8, %3 : vector<1x2x128xf32>
    %10 = arith.addf %7, %9 : vector<1x2x128xf32>
    %cst_10 = arith.constant 1.140000e-01 : f32
    %11 = vector.broadcast %cst_10 : f32 to vector<1x2x128xf32>
    %12 = arith.mulf %11, %5 : vector<1x2x128xf32>
    %13 = arith.addf %10, %12 : vector<1x2x128xf32>
    %c0_11 = arith.constant 0 : index
    %c0_12 = arith.constant 0 : index
    %c0_13 = arith.constant 0 : index
    %c0_14 = arith.constant 0 : index
    %14 = vector.load %arg3[%c0_11, %c0_12, %c0_13, %c0_14] : memref<1x3x2x128xf32, #tpu.memory_space<vmem>>, vector<1x1x2x128xf32>
    %15 = vector.shape_cast %14 : vector<1x1x2x128xf32> to vector<1x2x128xf32>
    %16 = vector.shape_cast %13 : vector<1x2x128xf32> to vector<1x1x2x128xf32>
    tpu.vector_store %arg3[%c0_11, %c0_12, %c0_13, %c0_14], %16 {strides = array<i32>} : memref<1x3x2x128xf32, #tpu.memory_space<vmem>>, vector<1x1x2x128xf32>,
    %c0_15 = arith.constant 0 : index
    %c1_16 = arith.constant 1 : index
    %c0_17 = arith.constant 0 : index
    %c0_18 = arith.constant 0 : index
    %17 = vector.load %arg3[%c0_15, %c1_16, %c0_17, %c0_18] : memref<1x3x2x128xf32, #tpu.memory_space<vmem>>, vector<1x1x2x128xf32>
    %18 = vector.shape_cast %17 : vector<1x1x2x128xf32> to vector<1x2x128xf32>
    %19 = vector.shape_cast %13 : vector<1x2x128xf32> to vector<1x1x2x128xf32>
    tpu.vector_store %arg3[%c0_15, %c1_16, %c0_17, %c0_18], %19 {strides = array<i32>} : memref<1x3x2x128xf32, #tpu.memory_space<vmem>>, vector<1x1x2x128xf32>,
    %c0_19 = arith.constant 0 : index
    %c2_20 = arith.constant 2 : index
    %c0_21 = arith.constant 0 : index
    %c0_22 = arith.constant 0 : index
    %20 = vector.load %arg3[%c0_19, %c2_20, %c0_21, %c0_22] : memref<1x3x2x128xf32, #tpu.memory_space<vmem>>, vector<1x1x2x128xf32>
    %21 = vector.shape_cast %20 : vector<1x1x2x128xf32> to vector<1x2x128xf32>
    %22 = vector.shape_cast %13 : vector<1x2x128xf32> to vector<1x1x2x128xf32>
    tpu.vector_store %arg3[%c0_19, %c2_20, %c0_21, %c0_22], %22 {strides = array<i32>} : memref<1x3x2x128xf32, #tpu.memory_space<vmem>>, vector<1x1x2x128xf32>,
    return
  }
  func.func @transform_0(%arg0: i32, %arg1: i32) -> (i32, i32, i32, i32) {
    %c0_i32 = arith.constant 0 : i32
    %c0_i32_0 = arith.constant 0 : i32
    %c0_i32_1 = arith.constant 0 : i32
    return %arg0, %c0_i32, %arg1, %c0_i32_0 : i32, i32, i32, i32
  }
  func.func @transform_1(%arg0: i32, %arg1: i32) -> (i32, i32, i32, i32) {
    %c0_i32 = arith.constant 0 : i32
    %c0_i32_0 = arith.constant 0 : i32
    %c0_i32_1 = arith.constant 0 : i32
    return %arg0, %c0_i32, %arg1, %c0_i32_0 : i32, i32, i32, i32
  }
}

</mosaic_0001>

<llo_original>
// kernel: tpu_custom_call.1
$region0: #{tpu_custom_call.1}
  #allocation0 [shape = 'u32[]', space=smem, size = 0x4, offset = 0x4, fixed_abs, tag = 'smem constant byte address 0x4 - core index']
  #allocation1 [shape = 'u32[72,128]{1,0:T(1,128)}', space=vmem, size = 0x9000, scoped, tag = 'internal scratch']
  %s0 = inlined_call_operand.hbm [shape: f32[2,3,2,128], index: 0, kind: input, shape index: {}]
  %s1 = inlined_call_operand.hbm [shape: f32[2,3,2,128], index: 1, kind: output, shape index: {}]
  %s2 = sld [smem:[#allocation0]]
  $region41: #{tpu_custom_call.1} parent=0
    _
  %s4 = ssub.s32 1, %s2
  %s5 = scalar_select 0, %s4, %s2
  $region1: #{tpu_custom_call.1} parent=0
    #allocation2 [shape = 'u8[6144]{0}', space=vmem, size = 0x1800, scoped, tag = 'input window, operand 0']
    #allocation3 [shape = 's32[2]{0}', space=sflag, size = 0x8, scoped, tag = 'scoped memory for tpu_custom_call.1']
    #allocation4 [shape = 's32[2]{0}', space=sflag, size = 0x8, scoped, tag = 'scoped memory for tpu_custom_call.1']
    #allocation5 [shape = 'u8[6144]{0}', space=vmem, size = 0x1800, scoped, tag = 'output window, operand 0']
    %6 = vsyncpa [#allocation3], 0
    %s7 = scalar_lea.sflag [#allocation3], 1
    %8 = vsyncpa %s7, 0
    %9 = vsyncpa [#allocation4], 0
    %s10 = scalar_lea.sflag [#allocation4], 1
    %11 = vsyncpa %s10, 0
    loop: start=0, step=1, limit=4
    $region2: #{tpu_custom_call.1} parent=1 // loop_pre_header
      _
    $region3: #{tpu_custom_call.1} parent=1 // loop_header
      %s13 = sphi 0, %s17
      %p14 = scmp.ge.s32.totalorder %s13, 4
      %s20 = sphi 0, %s32
      %s21 = sphi 0, %s28
      %s22 = sphi 0, %s20
      %s23 = sphi 0, %s21
      %s24 = sphi 0, %s22
      %s25 = sphi 0, %s23
      %s37 = sphi 0, %s39
      %s40 = sphi 0, %s37
      %s41 = sphi 0, %s40
      %s57 = sphi 0, %s41
      %s65 = sphi 0, %s67
      %s68 = sphi 0, %s65
      %s69 = sphi 0, %s68
      %s85 = sphi 0, %s69
    $region4: #{tpu_custom_call.1} parent=1 // loop_header_branch
      %16 = sbr.rel (%p14) target = $region8
    $region5: #{tpu_custom_call.1} parent=1 // loop_body
      %s18 = ssub.s32 %s13, 1
      %s19 = ssub.s32 %s13, 2
      %s26 = sadd.s32 1, %s21
      %p27 = scmp.ge.s32.totalorder %s26, 1
      %s28 = scalar_select %p27, 0, %s26
      %s29 = sadd.s32 1, %s20
      %s30 = scalar_select %p27, %s29, %s20
      %p31 = scmp.ge.s32.totalorder %s30, 2
      %s32 = scalar_select %p31, 0, %s30
      %s33 = ssub.s32 %s20, %s32
      %s34 = ssub.s32 %s21, %s28
      %s35 = sor.u32 %s33, %s34
      %p36 = scmp.eq.s32.totalorder %s35, 0
      %s38 = sadd.s32 %s37, 1
      %s39 = scalar_select %p36, %s37, %s38
      %p42 = pneg %p36
      %p43 = scmp.eq.s32.totalorder %s13, 1
      %p44 = por %p42, %p43
      %p45 = scmp.ne.s32.totalorder %s37, %s40
      %p46 = scmp.eq.s32.totalorder %s13, 0
      %p47 = por %p45, %p46
      %p48 = scmp.ne.s32.totalorder %s37, %s40
      %p49 = scmp.eq.s32.totalorder %s18, 1
      %p50 = por %p48, %p49
      %p51 = scmp.ne.s32.totalorder %s40, %s41
      %p52 = scmp.eq.s32.totalorder %s18, 0
      %p53 = por %p51, %p52
      %p54 = scmp.ne.s32.totalorder %s40, %s41
      %p55 = scmp.eq.s32.totalorder %s19, 1
      %p56 = por %p54, %p55
      %p58 = scmp.ne.s32.totalorder %s41, %s57
      %p59 = scmp.eq.s32.totalorder %s19, 0
      %p60 = por %p58, %p59
      %s61 = ssub.s32 %s20, %s32
      %s62 = ssub.s32 %s21, %s28
      %s63 = sor.u32 %s61, %s62
      %p64 = scmp.eq.s32.totalorder %s63, 0
      %s66 = sadd.s32 %s65, 1
      %s67 = scalar_select %p64, %s65, %s66
      %p70 = pneg %p64
      %p71 = scmp.eq.s32.totalorder %s13, 1
      %p72 = por %p70, %p71
      %p73 = scmp.ne.s32.totalorder %s65, %s68
      %p74 = scmp.eq.s32.totalorder %s13, 0
      %p75 = por %p73, %p74
      %p76 = scmp.ne.s32.totalorder %s65, %s68
      %p77 = scmp.eq.s32.totalorder %s18, 1
      %p78 = por %p76, %p77
      %p79 = scmp.ne.s32.totalorder %s68, %s69
      %p80 = scmp.eq.s32.totalorder %s18, 0
      %p81 = por %p79, %p80
      %p82 = scmp.ne.s32.totalorder %s68, %s69
      %p83 = scmp.eq.s32.totalorder %s19, 1
      %p84 = por %p82, %p83
      %p86 = scmp.ne.s32.totalorder %s69, %s85
      %p87 = scmp.eq.s32.totalorder %s19, 0
      %p88 = por %p86, %p87
      %p89 = scmp.le.s32.totalorder 1, %s13
      %p90 = scmp.lt.s32.totalorder %s13, 3
      %p91 = pnand %p89, %p90
      %p92 = pneg %p91
      // Predicated region
      $region9: #{tpu_custom_call.1} parent=5 // pred_check
        _
      $region10: #{tpu_custom_call.1} parent=5 // pred_check_branch
        %94 = sbr.rel (%p91) target = $region12
      $region11: #{tpu_custom_call.1} parent=5 // pred_region
        %s95 = ssub.s32 %s13, 1
      $region12: #{tpu_custom_call.1} parent=5 // pred_fallthru
        _
      %p96 = scmp.lt.s32.totalorder %s13, 2
      // Predicated region
      $region13: #{tpu_custom_call.1} parent=5 // pred_check
        %p97 = pneg %p96
      $region14: #{tpu_custom_call.1} parent=5 // pred_check_branch
        %99 = sbr.rel (%p97) target = $region16
      $region15: #{tpu_custom_call.1} parent=5 // pred_region
        // Predicated region
        $region17: #{tpu_custom_call.1} parent=15 // pred_check
          %p100 = pneg %p47
        $region18: #{tpu_custom_call.1} parent=15 // pred_check_branch
          %102 = sbr.rel (%p100) target = $region20
        $region19: #{tpu_custom_call.1} parent=15 // pred_region
          %s103 = sand.u32 %s37, 1
          %s104 = scalar_lea.sflag [#allocation3], %s103
          %s105 = sand.u32 %s37, 1
          %s106 = smul.addr %s105, 6
          %s107 = scalar_lea.vmem [#allocation2], %s106
          %109 = vsyncadd %s104, 0
          %s110 = smul.addr %s20, 3
          %s111 = sadd.s32 %s21, %s110
          %s112 = smul.addr %s111, 2
          %s113 = scalar_lea.hbm %s0, %s112
          %s114 = sshll.u32 %s113, 4
          %s115 = int_to_ptr.hbm [resolvable:$true] %s114
          %s116 = sshll.u32 %s107, 4
          %s117 = int_to_ptr.vmem [resolvable:$true] %s116
          %122 = dma.hbm_to_vmem [thread:$0]  %s115, 96, %s117, %s104, 32, 32, 2
        $region20: #{tpu_custom_call.1} parent=15 // pred_fallthru
          _
      $region16: #{tpu_custom_call.1} parent=5 // pred_fallthru
        _
      %p123 = scmp.le.s32.totalorder 1, %s13
      %p124 = scmp.lt.s32.totalorder %s13, 3
      %p125 = pnand %p123, %p124
      %p126 = pneg %p125
      // Predicated region
      $region21: #{tpu_custom_call.1} parent=5 // pred_check
        _
      $region22: #{tpu_custom_call.1} parent=5 // pred_check_branch
        %128 = sbr.rel (%p125) target = $region24
      $region23: #{tpu_custom_call.1} parent=5 // pred_region
        %s129 = ssub.s32 %s13, 1
        %s130 = sand.u32 %s40, 1
        %s131 = scalar_lea.sflag [#allocation3], %s130
        %s132 = sand.u32 %s40, 1
        %s133 = smul.addr %s132, 6
        %s134 = scalar_lea.vmem [#allocation2], %s133
        // Predicated region
        $region25: #{tpu_custom_call.1} parent=23 // pred_check
          %p135 = pneg %p53
        $region26: #{tpu_custom_call.1} parent=23 // pred_check_branch
          %137 = sbr.rel (%p135) target = $region28
        $region27: #{tpu_custom_call.1} parent=23 // pred_region
          %139 = dma.done %s131, 96
        $region28: #{tpu_custom_call.1} parent=23 // pred_fallthru
          _
        %s140 = sand.u32 %s40, 1
        %s141 = scalar_lea.sflag [#allocation3], %s140
        %s142 = sand.u32 %s40, 1
        %s143 = smul.addr %s142, 6
        %s144 = scalar_lea.vmem [#allocation2], %s143
        %p145 = pneg %p53
        %p146 = pneg %p50
        %p147 = pneg %p81
        %p148 = pneg %p78
        %s149 = sand.u32 %s68, 1
        %s150 = scalar_lea.sflag [#allocation4], %s149
        %s151 = sand.u32 %s68, 1
        %s152 = smul.addr %s151, 6
        %s153 = scalar_lea.vmem [#allocation5], %s152
        %v154 = vld [vmem:[%s134] sm:$0x3]
        %s155 = scalar_lea.vmem %s134, 2 [#allocation2]
        %v156 = vld [vmem:[%s155] sm:$0x3]
        %s157 = scalar_lea.vmem %s134, 4 [#allocation2]
        %v158 = vld [vmem:[%s157] sm:$0x3]
        %v159 = vmul.f32 %v154, 0.2989
        %v160 = vmul.f32 %v156, 0.587
        %v161 = vadd.f32 %v159, %v160
        %v162 = vmul.f32 %v158, 0.114
        %v163 = vadd.f32 %v161, %v162
        %164 = vst [vmem:[%s153] sm:$0x3] %v163
        %s165 = scalar_lea.vmem %s153, 2 [#allocation5]
        %166 = vst [vmem:[%s165] sm:$0x3] %v163
        %s167 = scalar_lea.vmem %s153, 4 [#allocation5]
        %168 = vst [vmem:[%s167] sm:$0x3] %v163
        %s169 = sand.u32 %s68, 1
        %s170 = scalar_lea.sflag [#allocation4], %s169
        %s171 = sand.u32 %s68, 1
        %s172 = smul.addr %s171, 6
        %s173 = scalar_lea.vmem [#allocation5], %s172
        // Predicated region
        $region29: #{tpu_custom_call.1} parent=23 // pred_check
          %p174 = pneg %p78
        $region30: #{tpu_custom_call.1} parent=23 // pred_check_branch
          %176 = sbr.rel (%p174) target = $region32
        $region31: #{tpu_custom_call.1} parent=23 // pred_region
          %178 = vsyncadd %s170, 0
          %s179 = smul.addr %s22, 3
          %s180 = sadd.s32 %s23, %s179
          %s181 = smul.addr %s180, 2
          %s182 = scalar_lea.hbm %s1, %s181
          %s183 = sshll.u32 %s173, 4
          %s184 = int_to_ptr.vmem [resolvable:$true] %s183
          %s185 = sshll.u32 %s182, 4
          %s186 = int_to_ptr.hbm [resolvable:$true] %s185
          %191 = dma.vmem_to_hbm [thread:$0]  %s184, 96, %s186, %s170, 32, 32, 2
        $region32: #{tpu_custom_call.1} parent=23 // pred_fallthru
          _
      $region24: #{tpu_custom_call.1} parent=5 // pred_fallthru
        _
      %p192 = scmp.le.s32.totalorder 2, %s13
      // Predicated region
      $region33: #{tpu_custom_call.1} parent=5 // pred_check
        %p193 = pneg %p192
      $region34: #{tpu_custom_call.1} parent=5 // pred_check_branch
        %195 = sbr.rel (%p193) target = $region36
      $region35: #{tpu_custom_call.1} parent=5 // pred_region
        %s196 = ssub.s32 %s13, 2
        // Predicated region
        $region37: #{tpu_custom_call.1} parent=35 // pred_check
          %p197 = pneg %p84
        $region38: #{tpu_custom_call.1} parent=35 // pred_check_branch
          %199 = sbr.rel (%p197) target = $region40
        $region39: #{tpu_custom_call.1} parent=35 // pred_region
          %s200 = sand.u32 %s69, 1
          %s201 = scalar_lea.sflag [#allocation4], %s200
          %s202 = sand.u32 %s69, 1
          %s203 = smul.addr %s202, 6
          %s204 = scalar_lea.vmem [#allocation5], %s203
          %206 = dma.done %s201, 96
        $region40: #{tpu_custom_call.1} parent=35 // pred_fallthru
          _
      $region36: #{tpu_custom_call.1} parent=5 // pred_fallthru
        _
    $region6: #{tpu_custom_call.1} parent=1 // loop_footer
      %s17 = sadd.s32 1, %s13
    $region7: #{tpu_custom_call.1} parent=1 // loop_footer_branch
      %12 = sbr.rel target = $region3
    $region8: #{tpu_custom_call.1} parent=1 // loop_exit
      _
    %207 = vsyncpa [#allocation3], 1
    %s208 = scalar_lea.sflag [#allocation3], 1
    %209 = vsyncpa %s208, 1
    %210 = vsyncpa [#allocation4], 1
    %s211 = scalar_lea.sflag [#allocation4], 1
    %212 = vsyncpa %s211, 1

</llo_original>
